<compile_context>
chip_gen: v6e
topology: v6e:2x2x1
jax: 0.10.0
libtpu: 0.0.40
codegen_flags: <defaults>
</compile_context>

<pallas_src>
import functools
import math

import jax
import jax.numpy as jnp
import numpy as np
from jax.experimental import pallas as pl
from jax.experimental.pallas import tpu as pltpu


def _ada_rmsnorm_packed_kernel(ada_ref, seg_ref, x_ref, o_ref, *, eps):
    # ada_ref: (1, Cp)  adaptive scale tiled P times along lanes (per batch)
    # seg_ref: (Cp, Cp) block-diagonal segment matrix, ones-blocks pre-scaled by 1/C
    # x_ref  : (TN, Cp) lane-packed tile (each C-lane segment is one logical row)
    # o_ref  : (TN, Cp)
    x = x_ref[...]                                   # load once, reuse
    x_f32 = x.astype(jnp.float32)
    sq = x_f32 * x_f32
    # Segmented reduce + broadcast + 1/C in one MXU matmul: lane j gets mean over its segment.
    mean_sq = jnp.dot(sq, seg_ref[...],
                      preferred_element_type=jnp.float32,
                      precision=jax.lax.Precision.HIGHEST)
    scale = ada_ref[...] * jax.lax.rsqrt(mean_sq + eps)          # (1,Cp)*(TN,Cp)
    o_ref[...] = x * scale.astype(o_ref.dtype)                   # torch: cast scale, then multiply


def _ada_rmsnorm_plain_kernel(ada_ref, x_ref, o_ref, *, eps):
    # ada_ref: (1, C), x_ref/o_ref: (TN, C)   (used when C >= 128 or not packable)
    x = x_ref[...]
    x_f32 = x.astype(jnp.float32)
    mean_sq = jnp.mean(x_f32 * x_f32, axis=-1, keepdims=True)    # (TN, 1)
    scale = ada_ref[...] * jax.lax.rsqrt(mean_sq + eps)          # (TN, C)
    o_ref[...] = x * scale.astype(o_ref.dtype)


def _round_up(v, m):
    return ((v + m - 1) // m) * m


def _device_budget():
    """(target x-bytes per tile, vmem_limit_bytes) chosen by TPU generation."""
    kind = ""
    try:
        kind = jax.devices()[0].device_kind.lower()
    except Exception:
        pass
    if "v7" in kind:                       # 64 MiB physical VMEM per TC
        return 4 * 1024 * 1024, 44 * 1024 * 1024
    if "v6" in kind:                       # 128 MiB physical VMEM
        return 8 * 1024 * 1024, 64 * 1024 * 1024
    if "v5" in kind or "v4" in kind:       # 128 MiB physical VMEM (keep override: v5e scoped default is 16 MiB)
        return 4 * 1024 * 1024, 64 * 1024 * 1024
    return 4 * 1024 * 1024, 40 * 1024 * 1024


def ada_rms_norm(x, context, weight, *, eps=1e-6, block_rows=None):
    """x: (B, N, C), context: (B, C_ctx), weight: (C, C_ctx) (torch Linear layout)."""
    B, N, C = x.shape
    Bc, C_ctx = context.shape
    assert Bc == B and weight.shape == (C, C_ctx)

    # Hoisted adaptive scale: one tiny XLA GEMM in f32 (zero-init weight => ada == 1).
    ada = context.astype(jnp.float32) @ weight.astype(jnp.float32).T + 1.0   # (B, C)

    # Lane-dense packing: view P consecutive logical rows as one Cp-lane row where
    # Cp = lcm(C, 128) is a multiple of 128 (unmasked stores).  Guard the seg-matrix
    # size (Cp <= 512 -> <= 1 MiB f32) and require N divisible by P.
    P = 1
    if C < 128:
        cand = math.lcm(C, 128) // C
        if cand * C <= 512 and N % cand == 0:
            P = cand
    Cp = P * C
    Np = N // P

    x_p = x.reshape(B, Np, Cp)                              # free reshape (C innermost)
    if P > 1:
        ada_p = jnp.tile(ada, (1, P)).reshape(B, 1, Cp)     # ada_p[b, 0, s*C + c] = ada[b, c]
    else:
        ada_p = ada.reshape(B, 1, Cp)

    # --- Tile sizing ---------------------------------------------------------
    itemsize = jnp.dtype(x.dtype).itemsize
    sublane = max(8, 32 // itemsize)                        # 8 f32, 16 bf16, 32 int8
    target_bytes, vmem_limit = _device_budget()
    # Effective VMEM bytes per x element: in + out double buffers (2x each) plus
    # full-tile f32 temps (x_f32, sq, mean_sq, scale on the packed path).
    eff_bytes = 4 * itemsize + (16 if P > 1 else 12)

    if block_rows is None:
        rows_by_target = target_bytes // (Cp * itemsize)
        rows_by_vmem = (vmem_limit * 7 // 10) // (Cp * eff_bytes)
        block_rows = max(sublane, min(rows_by_target, rows_by_vmem))
    block_rows = int(min(block_rows, Np))
    if block_rows < Np:
        block_rows = max(sublane, (block_rows // sublane) * sublane)

    # Keep at least 2 parallel grid steps so both v7x TensorCores get work.
    if B * pl.cdiv(Np, block_rows) < 2 and Np >= 2 * sublane:
        block_rows = min(Np, max(sublane, _round_up(pl.cdiv(Np, 2), sublane)))

    grid = (B, pl.cdiv(Np, block_rows))
    cparams = pltpu.CompilerParams(
        dimension_semantics=("parallel", "parallel"),
        vmem_limit_bytes=int(vmem_limit),
    )
    x_spec = pl.BlockSpec((None, block_rows, Cp), lambda b, i: (b, i, 0))
    ada_spec = pl.BlockSpec((None, 1, Cp), lambda b, i: (b, 0, 0))
    out_spec = pl.BlockSpec((None, block_rows, Cp), lambda b, i: (b, i, 0))

    if P > 1:
        # Block-diagonal (Cp, Cp) matrix with 1/C in each C x C ones-block:
        # one MXU matmul does segment-sum, broadcast and the 1/C scale.
        seg = (np.arange(Cp)[:, None] // C) == (np.arange(Cp)[None, :] // C)
        seg = jnp.asarray(seg.astype(np.float32) / float(C))
        kernel = functools.partial(_ada_rmsnorm_packed_kernel, eps=eps)
        in_specs = [ada_spec, pl.BlockSpec((Cp, Cp), lambda b, i: (0, 0)), x_spec]
        operands = (ada_p, seg, x_p)
    else:
        kernel = functools.partial(_ada_rmsnorm_plain_kernel, eps=eps)
        in_specs = [ada_spec, x_spec]
        operands = (ada_p, x_p)

    out = pl.pallas_call(
        kernel,
        out_shape=jax.ShapeDtypeStruct((B, Np, Cp), x.dtype),
        grid_spec=pltpu.PrefetchScalarGridSpec(
            num_scalar_prefetch=0,
            grid=grid,
            in_specs=in_specs,
            out_specs=out_spec,
        ),
        compiler_params=cparams,
    )(*operands)

    return out.reshape(B, N, C)


def ada_rms_norm_ref(x, context, weight, eps=1e-6):
    xf = x.astype(jnp.float32)
    ada = context.astype(jnp.float32) @ weight.astype(jnp.float32).T + 1.0   # (B, C)
    mean_sq = jnp.mean(xf * xf, axis=-1, keepdims=True)                      # (B, N, 1)
    scale = ada[:, None, :] * jax.lax.rsqrt(mean_sq + eps)
    return x * scale.astype(x.dtype)


if __name__ == "__main__":
    key = jax.random.PRNGKey(0)
    kx, kc, kw, kx2, kc2, kw2, kx3, kw3 = jax.random.split(key, 8)

    ok = True

    def check(xv, cv, wv, rtol, atol):
        out = jax.block_until_ready(ada_rms_norm(xv, cv, wv))
        ref = jax.block_until_ready(ada_rms_norm_ref(xv, cv, wv))
        return bool(np.allclose(np.asarray(out, dtype=np.float32),
                                np.asarray(ref, dtype=np.float32),
                                rtol=rtol, atol=atol))

    # --- Case 1: small C, 128 % C == 0 (lane-packed path, P=4).  x: (B, H*W, C). ---
    B, H, W, C, C_ctx = 2, 16, 16, 32, 16
    N = H * W
    x = jax.random.normal(kx, (B, N, C), dtype=jnp.float32)
    context = jax.random.normal(kc, (B, C_ctx), dtype=jnp.float32)
    weight_zero = jnp.zeros((C, C_ctx), dtype=jnp.float32)       # module zero-init
    weight_rand = 0.05 * jax.random.normal(kw, (C, C_ctx), dtype=jnp.float32)

    ok &= check(x, context, weight_zero, 1e-5, 1e-5)
    ok &= check(x, context, weight_rand, 1e-5, 1e-5)

    # bf16 input on the packed path (checks cast-then-multiply parity + bf16 tiling).
    ok &= check(x.astype(jnp.bfloat16), context, weight_rand, 2e-2, 2e-2)

    # --- Case 2: C = 96 (doesn't divide 128): packed via lcm -> Cp = 384, P = 4. ---
    B3, N3, C3 = 2, 64, 96
    x3 = jax.random.normal(kx3, (B3, N3, C3), dtype=jnp.float32)
    w3 = 0.05 * jax.random.normal(kw3, (C3, C_ctx), dtype=jnp.float32)
    ok &= check(x3, context, w3, 1e-5, 1e-5)

    # --- Case 3: C = 128 (plain lane-dense path). ---
    B2, N2, C2 = 2, 64, 128
    x2 = jax.random.normal(kx2, (B2, N2, C2), dtype=jnp.float32)
    ctx2 = jax.random.normal(kc2, (B2, C_ctx), dtype=jnp.float32)
    w2 = 0.05 * jax.random.normal(kw2, (C2, C_ctx), dtype=jnp.float32)
    ok &= check(x2, ctx2, w2, 1e-5, 1e-5)

    if ok:
        print("KERNEL_OK")
    else:
        print("KERNEL_MISMATCH")
</pallas_src>

<mosaic_0001>
module attributes {stable_mosaic.version = 11 : i64} {
  func.func @_ada_rmsnorm_packed_kernel(%arg0: i32, %arg1: i32, %arg2: memref<1x1x128xf32, #tpu.memory_space<vmem>>, %arg3: memref<128x128xf32, #tpu.memory_space<vmem>>, %arg4: memref<1x64x128xf32, #tpu.memory_space<vmem>>, %arg5: memref<1x64x128xf32, #tpu.memory_space<vmem>>) attributes {dimension_semantics = [#tpu.dimension_semantics<parallel>, #tpu.dimension_semantics<parallel>], iteration_bounds = array<i64: 2, 1>, scalar_prefetch = 0 : i64, scratch_operands = 0 : i64, tpu.core_type = #tpu.core_type<tc>, window_params = [{transform_indices = @transform_0, window_bounds = array<i64: 1, 1, 128>}, {pipeline_mode = #tpu.pipeline_mode<synchronous>, transform_indices = @transform_1, window_bounds = array<i64: 128, 128>}, {transform_indices = @transform_2, window_bounds = array<i64: 1, 64, 128>}, {transform_indices = @transform_3, window_bounds = array<i64: 1, 64, 128>}]} {
    %c0 = arith.constant 0 : index
    %c0_0 = arith.constant 0 : index
    %c0_1 = arith.constant 0 : index
    %0 = vector.load %arg4[%c0, %c0_0, %c0_1] : memref<1x64x128xf32, #tpu.memory_space<vmem>>, vector<1x64x128xf32>
    %1 = vector.shape_cast %0 : vector<1x64x128xf32> to vector<64x128xf32>
    %2 = arith.mulf %1, %1 : vector<64x128xf32>
    %c0_2 = arith.constant 0 : index
    %c0_3 = arith.constant 0 : index
    %3 = vector.load %arg3[%c0_2, %c0_3] : memref<128x128xf32, #tpu.memory_space<vmem>>, vector<128x128xf32>
    %cst = arith.constant dense<0.000000e+00> : vector<64x128xf32>
    %4 = tpu.matmul %2, %3, %cst {dimension_numbers = #tpu.dot_dimension_numbers<[1], [0], [0], [1], [0, 0, 1, 1], [], []>, precision = #tpu.contract_precision<fp32>} : vector<64x128xf32>, vector<128x128xf32>, vector<64x128xf32> -> vector<64x128xf32>
    %c0_4 = arith.constant 0 : index
    %c0_5 = arith.constant 0 : index
    %c0_6 = arith.constant 0 : index
    %5 = vector.load %arg2[%c0_4, %c0_5, %c0_6] : memref<1x1x128xf32, #tpu.memory_space<vmem>>, vector<1x1x128xf32>
    %6 = vector.shape_cast %5 : vector<1x1x128xf32> to vector<1x128xf32>
    %cst_7 = arith.constant 9.99999997E-7 : f32
    %7 = vector.broadcast %cst_7 : f32 to vector<64x128xf32>
    %8 = arith.addf %4, %7 : vector<64x128xf32>
    %9 = math.rsqrt %8 : vector<64x128xf32>
    %10 = vector.broadcast %6 : vector<1x128xf32> to vector<64x128xf32>
    %11 = arith.mulf %10, %9 : vector<64x128xf32>
    %12 = arith.mulf %1, %11 : vector<64x128xf32>
    %c0_8 = arith.constant 0 : index
    %c0_9 = arith.constant 0 : index
    %c0_10 = arith.constant 0 : index
    %13 = vector.load %arg5[%c0_8, %c0_9, %c0_10] : memref<1x64x128xf32, #tpu.memory_space<vmem>>, vector<1x64x128xf32>
    %14 = vector.shape_cast %13 : vector<1x64x128xf32> to vector<64x128xf32>
    %15 = vector.shape_cast %12 : vector<64x128xf32> to vector<1x64x128xf32>
    tpu.vector_store %arg5[%c0_8, %c0_9, %c0_10], %15 {strides = array<i32>} : memref<1x64x128xf32, #tpu.memory_space<vmem>>, vector<1x64x128xf32>,
    return
  }
  func.func @transform_0(%arg0: i32, %arg1: i32) -> (i32, i32, i32) {
    %c0_i32 = arith.constant 0 : i32
    %c0_i32_0 = arith.constant 0 : i32
    %c0_i32_1 = arith.constant 0 : i32
    return %arg0, %c0_i32, %c0_i32_0 : i32, i32, i32
  }
  func.func @transform_1(%arg0: i32, %arg1: i32) -> (i32, i32) {
    %c0_i32 = arith.constant 0 : i32
    %c0_i32_0 = arith.constant 0 : i32
    %c0_i32_1 = arith.constant 0 : i32
    return %c0_i32, %c0_i32_0 : i32, i32
  }
  func.func @transform_2(%arg0: i32, %arg1: i32) -> (i32, i32, i32) {
    %c0_i32 = arith.constant 0 : i32
    %c0_i32_0 = arith.constant 0 : i32
    return %arg0, %arg1, %c0_i32 : i32, i32, i32
  }
  func.func @transform_3(%arg0: i32, %arg1: i32) -> (i32, i32, i32) {
    %c0_i32 = arith.constant 0 : i32
    %c0_i32_0 = arith.constant 0 : i32
    return %arg0, %arg1, %c0_i32 : i32, i32, i32
  }
}

</mosaic_0001>

<llo_original>
// kernel: tpu_custom_call.1
$region0: #{tpu_custom_call.1}
  #allocation0 [shape = 'u32[]', space=smem, size = 0x4, offset = 0x4, fixed_abs, tag = 'smem constant byte address 0x4 - core index']
  #allocation1 [shape = 'u32[144,128]{1,0:T(1,128)}', space=vmem, size = 0x12000, scoped, tag = 'internal scratch']
  %s0 = inlined_call_operand.hbm [shape: f32[2,1,128], index: 0, kind: input, shape index: {}]
  %s1 = inlined_call_operand.hbm [shape: f32[128,128], index: 1, kind: input, shape index: {}]
  %s2 = inlined_call_operand.hbm [shape: f32[2,64,128], index: 2, kind: input, shape index: {}]
  %s3 = inlined_call_operand.hbm [shape: f32[2,64,128], index: 3, kind: output, shape index: {}]
  %s4 = sld [smem:[#allocation0]]
  $region57: #{tpu_custom_call.1} parent=0
    _
  %s6 = ssub.s32 1, %s4
  %s7 = scalar_select 0, %s6, %s4
  $region1: #{tpu_custom_call.1} parent=0
    #allocation2 [shape = 'u8[1024]{0}', space=vmem, size = 0x400, scoped, tag = 'input window, operand 0']
    #allocation3 [shape = 's32[2]{0}', space=sflag, size = 0x8, scoped, tag = 'scoped memory for tpu_custom_call.1']
    #allocation4 [shape = 's32[2]{0}', space=sflag, size = 0x8, scoped, tag = 'scoped memory for tpu_custom_call.1']
    #allocation5 [shape = 'u8[65536]{0}', space=vmem, size = 0x10000, scoped, tag = 'input window, operand 1, single buffered']
    #allocation6 [shape = 's32[1]{0}', space=sflag, size = 0x4, scoped, tag = 'scoped memory for tpu_custom_call.1']
    #allocation7 [shape = 'u8[65536]{0}', space=vmem, size = 0x10000, scoped, tag = 'input window, operand 2']
    #allocation8 [shape = 'u8[65536]{0}', space=vmem, size = 0x10000, scoped, tag = 'output window, operand 0']
    %8 = vsyncpa [#allocation3], 0
    %s9 = scalar_lea.sflag [#allocation3], 1
    %10 = vsyncpa %s9, 0
    %11 = vsyncpa [#allocation6], 0
    %12 = vsyncpa [#allocation4], 0
    %s13 = scalar_lea.sflag [#allocation4], 1
    %14 = vsyncpa %s13, 0
    loop: start=0, step=1, limit=4
    $region2: #{tpu_custom_call.1} parent=1 // loop_pre_header
      _
    $region3: #{tpu_custom_call.1} parent=1 // loop_header
      %s16 = sphi 0, %s20
      %p17 = scmp.ge.s32.totalorder %s16, 4
      %s23 = sphi 0, %s35
      %s24 = sphi 0, %s31
      %s25 = sphi 0, %s23
      %s26 = sphi 0, %s24
      %s27 = sphi 0, %s25
      %s28 = sphi 0, %s26
      %s38 = sphi 0, %s40
      %s41 = sphi 0, %s38
      %s42 = sphi 0, %s41
      %s58 = sphi 0, %s42
      %s62 = sphi 0, %s62
      %s64 = sphi 0, %s62
      %s65 = sphi 0, %s64
      %s79 = sphi 0, %s65
      %s87 = sphi 0, %s89
      %s90 = sphi 0, %s87
      %s91 = sphi 0, %s90
      %s107 = sphi 0, %s91
      %s115 = sphi 0, %s117
      %s118 = sphi 0, %s115
      %s119 = sphi 0, %s118
      %s135 = sphi 0, %s119
    $region4: #{tpu_custom_call.1} parent=1 // loop_header_branch
      %19 = sbr.rel (%p17) target = $region8
    $region5: #{tpu_custom_call.1} parent=1 // loop_body
      %s21 = ssub.s32 %s16, 1
      %s22 = ssub.s32 %s16, 2
      %s29 = sadd.s32 1, %s24
      %p30 = scmp.ge.s32.totalorder %s29, 1
      %s31 = scalar_select %p30, 0, %s29
      %s32 = sadd.s32 1, %s23
      %s33 = scalar_select %p30, %s32, %s23
      %p34 = scmp.ge.s32.totalorder %s33, 2
      %s35 = scalar_select %p34, 0, %s33
      %s36 = ssub.s32 %s23, %s35
      %p37 = scmp.eq.s32.totalorder %s36, 0
      %s39 = sadd.s32 %s38, 1
      %s40 = scalar_select %p37, %s38, %s39
      %p43 = pneg %p37
      %p44 = scmp.eq.s32.totalorder %s16, 1
      %p45 = por %p43, %p44
      %p46 = scmp.ne.s32.totalorder %s38, %s41
      %p47 = scmp.eq.s32.totalorder %s16, 0
      %p48 = por %p46, %p47
      %p49 = scmp.ne.s32.totalorder %s38, %s41
      %p50 = scmp.eq.s32.totalorder %s21, 1
      %p51 = por %p49, %p50
      %p52 = scmp.ne.s32.totalorder %s41, %s42
      %p53 = scmp.eq.s32.totalorder %s21, 0
      %p54 = por %p52, %p53
      %p55 = scmp.ne.s32.totalorder %s41, %s42
      %p56 = scmp.eq.s32.totalorder %s22, 1
      %p57 = por %p55, %p56
      %p59 = scmp.ne.s32.totalorder %s42, %s58
      %p60 = scmp.eq.s32.totalorder %s22, 0
      %p61 = por %p59, %p60
      %s63 = sadd.s32 %s62, 1
      %p66 = scmp.eq.s32.totalorder %s16, 1
      %p67 = scmp.ne.s32.totalorder %s62, %s64
      %p68 = scmp.eq.s32.totalorder %s16, 0
      %p69 = por %p67, %p68
      %p70 = scmp.ne.s32.totalorder %s62, %s64
      %p71 = scmp.eq.s32.totalorder %s21, 1
      %p72 = por %p70, %p71
      %p73 = scmp.ne.s32.totalorder %s64, %s65
      %p74 = scmp.eq.s32.totalorder %s21, 0
      %p75 = por %p73, %p74
      %p76 = scmp.ne.s32.totalorder %s64, %s65
      %p77 = scmp.eq.s32.totalorder %s22, 1
      %p78 = por %p76, %p77
      %p80 = scmp.ne.s32.totalorder %s65, %s79
      %p81 = scmp.eq.s32.totalorder %s22, 0
      %p82 = por %p80, %p81
      %s83 = ssub.s32 %s23, %s35
      %s84 = ssub.s32 %s24, %s31
      %s85 = sor.u32 %s83, %s84
      %p86 = scmp.eq.s32.totalorder %s85, 0
      %s88 = sadd.s32 %s87, 1
      %s89 = scalar_select %p86, %s87, %s88
      %p92 = pneg %p86
      %p93 = scmp.eq.s32.totalorder %s16, 1
      %p94 = por %p92, %p93
      %p95 = scmp.ne.s32.totalorder %s87, %s90
      %p96 = scmp.eq.s32.totalorder %s16, 0
      %p97 = por %p95, %p96
      %p98 = scmp.ne.s32.totalorder %s87, %s90
      %p99 = scmp.eq.s32.totalorder %s21, 1
      %p100 = por %p98, %p99
      %p101 = scmp.ne.s32.totalorder %s90, %s91
      %p102 = scmp.eq.s32.totalorder %s21, 0
      %p103 = por %p101, %p102
      %p104 = scmp.ne.s32.totalorder %s90, %s91
      %p105 = scmp.eq.s32.totalorder %s22, 1
      %p106 = por %p104, %p105
      %p108 = scmp.ne.s32.totalorder %s91, %s107
      %p109 = scmp.eq.s32.totalorder %s22, 0
      %p110 = por %p108, %p109
      %s111 = ssub.s32 %s23, %s35
      %s112 = ssub.s32 %s24, %s31
      %s113 = sor.u32 %s111, %s112
      %p114 = scmp.eq.s32.totalorder %s113, 0
      %s116 = sadd.s32 %s115, 1
      %s117 = scalar_select %p114, %s115, %s116
      %p120 = pneg %p114
      %p121 = scmp.eq.s32.totalorder %s16, 1
      %p122 = por %p120, %p121
      %p123 = scmp.ne.s32.totalorder %s115, %s118
      %p124 = scmp.eq.s32.totalorder %s16, 0
      %p125 = por %p123, %p124
      %p126 = scmp.ne.s32.totalorder %s115, %s118
      %p127 = scmp.eq.s32.totalorder %s21, 1
      %p128 = por %p126, %p127
      %p129 = scmp.ne.s32.totalorder %s118, %s119
      %p130 = scmp.eq.s32.totalorder %s21, 0
      %p131 = por %p129, %p130
      %p132 = scmp.ne.s32.totalorder %s118, %s119
      %p133 = scmp.eq.s32.totalorder %s22, 1
      %p134 = por %p132, %p133
      %p136 = scmp.ne.s32.totalorder %s119, %s135
      %p137 = scmp.eq.s32.totalorder %s22, 0
      %p138 = por %p136, %p137
      %p139 = scmp.le.s32.totalorder 1, %s16
      %p140 = scmp.lt.s32.totalorder %s16, 3
      %p141 = pnand %p139, %p140
      %p142 = pneg %p141
      // Predicated region
      $region9: #{tpu_custom_call.1} parent=5 // pred_check
        _
      $region10: #{tpu_custom_call.1} parent=5 // pred_check_branch
        %144 = sbr.rel (%p141) target = $region12
      $region11: #{tpu_custom_call.1} parent=5 // pred_region
        %s145 = ssub.s32 %s16, 1
        // Predicated region
        $region13: #{tpu_custom_call.1} parent=11 // pred_check
          %p146 = pneg %p75
        $region14: #{tpu_custom_call.1} parent=11 // pred_check_branch
          %148 = sbr.rel (%p146) target = $region16
        $region15: #{tpu_custom_call.1} parent=11 // pred_region
          %s150 = ssub.s32 2048, 2048
          %151 = vsyncadd [#allocation6], %s150
          %s152 = sshll.u32 [#allocation5], 4
          %s153 = int_to_ptr.vmem [resolvable:$true] %s152
          %158 = dma.hbm_to_vmem [thread:$0]  %s1, 2048, %s153, [#allocation6], 128, 128, 8
        $region16: #{tpu_custom_call.1} parent=11 // pred_fallthru
          _
      $region12: #{tpu_custom_call.1} parent=5 // pred_fallthru
        _
      %p159 = scmp.lt.s32.totalorder %s16, 2
      // Predicated region
      $region17: #{tpu_custom_call.1} parent=5 // pred_check
        %p160 = pneg %p159
      $region18: #{tpu_custom_call.1} parent=5 // pred_check_branch
        %162 = sbr.rel (%p160) target = $region20
      $region19: #{tpu_custom_call.1} parent=5 // pred_region
        // Predicated region
        $region21: #{tpu_custom_call.1} parent=19 // pred_check
          %p163 = pneg %p48
        $region22: #{tpu_custom_call.1} parent=19 // pred_check_branch
          %165 = sbr.rel (%p163) target = $region24
        $region23: #{tpu_custom_call.1} parent=19 // pred_region
          %s166 = sand.u32 %s16, 1
          %s167 = scalar_lea.sflag [#allocation3], %s166
          %s168 = sand.u32 %s38, 1
          %s169 = scalar_lea.vmem [#allocation2], %s168
          %s171 = ssub.s32 16, 16
          %172 = vsyncadd %s167, %s171
          %s173 = smul.addr %s23, 16
          %s174 = scalar_lea.hbm %s0, %s173
          %s176 = sshll.u32 %s169, 4
          %s177 = int_to_ptr.vmem [resolvable:$true] %s176
          %179 = dma.hbm_to_vmem [thread:$0]  %s174, 16, %s177, %s167
        $region24: #{tpu_custom_call.1} parent=19 // pred_fallthru
          _
        // Predicated region
        $region25: #{tpu_custom_call.1} parent=19 // pred_check
          %p180 = pneg %p97
        $region26: #{tpu_custom_call.1} parent=19 // pred_check_branch
          %182 = sbr.rel (%p180) target = $region28
        $region27: #{tpu_custom_call.1} parent=19 // pred_region
          %s183 = sand.u32 %s16, 1
          %s184 = scalar_lea.sflag [#allocation3], %s183
          %s185 = sand.u32 %s87, 1
          %s186 = smul.addr %s185, 64
          %s187 = scalar_lea.vmem [#allocation7], %s186
          %s188 = smul.u32 8, %s24
          %s190 = ssub.s32 1024, 1024
          %191 = vsyncadd %s184, %s190
          %s192 = smul.addr %s23, 8
          %s193 = sadd.s32 %s188, %s192
          %s194 = smul.addr %s193, 128
          %s195 = scalar_lea.hbm %s2, %s194
          %s196 = sshll.u32 %s187, 4
          %s197 = int_to_ptr.vmem [resolvable:$true] %s196
          %202 = dma.hbm_to_vmem [thread:$0]  %s195, 1024, %s197, %s184, 128, 128, 8
        $region28: #{tpu_custom_call.1} parent=19 // pred_fallthru
          _
      $region20: #{tpu_custom_call.1} parent=5 // pred_fallthru
        _
      %p203 = scmp.le.s32.totalorder 1, %s16
      %p204 = scmp.lt.s32.totalorder %s16, 3
      %p205 = pnand %p203, %p204
      %p206 = pneg %p205
      // Predicated region
      $region29: #{tpu_custom_call.1} parent=5 // pred_check
        _
      $region30: #{tpu_custom_call.1} parent=5 // pred_check_branch
        %208 = sbr.rel (%p205) target = $region32
      $region31: #{tpu_custom_call.1} parent=5 // pred_region
        %s209 = ssub.s32 %s16, 1
        %s210 = sand.u32 %s21, 1
        %s211 = scalar_lea.sflag [#allocation3], %s210
        %s212 = sand.u32 %s41, 1
        %s213 = scalar_lea.vmem [#allocation2], %s212
        // Predicated region
        $region33: #{tpu_custom_call.1} parent=31 // pred_check
          %p214 = pneg %p54
        $region34: #{tpu_custom_call.1} parent=31 // pred_check_branch
          %216 = sbr.rel (%p214) target = $region36
        $region35: #{tpu_custom_call.1} parent=31 // pred_region
          %217 = dma.done %s211, 16
        $region36: #{tpu_custom_call.1} parent=31 // pred_fallthru
          _
        // Predicated region
        $region37: #{tpu_custom_call.1} parent=31 // pred_check
          %p218 = pneg %p75
        $region38: #{tpu_custom_call.1} parent=31 // pred_check_branch
          %220 = sbr.rel (%p218) target = $region40
        $region39: #{tpu_custom_call.1} parent=31 // pred_region
          %221 = dma.done [#allocation6], 2048
        $region40: #{tpu_custom_call.1} parent=31 // pred_fallthru
          _
        %s222 = sand.u32 %s21, 1
        %s223 = scalar_lea.sflag [#allocation3], %s222
        %s224 = sand.u32 %s90, 1
        %s225 = smul.addr %s224, 64
        %s226 = scalar_lea.vmem [#allocation7], %s225
        // Predicated region
        $region41: #{tpu_custom_call.1} parent=31 // pred_check
          %p227 = pneg %p103
        $region42: #{tpu_custom_call.1} parent=31 // pred_check_branch
          %229 = sbr.rel (%p227) target = $region44
        $region43: #{tpu_custom_call.1} parent=31 // pred_region
          %230 = dma.done %s223, 1024
        $region44: #{tpu_custom_call.1} parent=31 // pred_fallthru
          _
        %s231 = sand.u32 %s21, 1
        %s232 = scalar_lea.sflag [#allocation3], %s231
        %s233 = sand.u32 %s41, 1
        %s234 = scalar_lea.vmem [#allocation2], %s233
        %p235 = pneg %p54
        %p236 = pneg %p51
        %p237 = pneg %p75
        %p238 = pneg %p72
        %s239 = sand.u32 %s21, 1
        %s240 = scalar_lea.sflag [#allocation3], %s239
        %s241 = sand.u32 %s90, 1
        %s242 = smul.addr %s241, 64
        %s243 = scalar_lea.vmem [#allocation7], %s242
        %p244 = pneg %p103
        %p245 = pneg %p100
        %p246 = pneg %p131
        %p247 = pneg %p128
        %s248 = sand.u32 %s118, 1
        %s249 = scalar_lea.sflag [#allocation4], %s248
        %s250 = sand.u32 %s118, 1
        %s251 = smul.addr %s250, 64
        %s252 = scalar_lea.vmem [#allocation8], %s251
        %s253 = smul.u32 8, %s26
        %s254 = smul.u32 8, %s26
        %v255 = vld [vmem:[%s226] sm:$0xff]
        %v256 = vld [vmem:[%s226 + $0x8] sm:$0xff]
        %v257 = vld [vmem:[%s226 + $0x10] sm:$0xff]
        %v258 = vld [vmem:[%s226 + $0x18] sm:$0xff]
        %v259 = vld [vmem:[%s226 + $0x20] sm:$0xff]
        %v260 = vld [vmem:[%s226 + $0x28] sm:$0xff]
        %v261 = vld [vmem:[%s226 + $0x30] sm:$0xff]
        %v262 = vld [vmem:[%s226 + $0x38] sm:$0xff]
        %v263 = vmul.f32 %v255, %v255
        %v264 = vmul.f32 %v256, %v256
        %v265 = vmul.f32 %v257, %v257
        %v266 = vmul.f32 %v258, %v258
        %v267 = vmul.f32 %v259, %v259
        %v268 = vmul.f32 %v260, %v260
        %v269 = vmul.f32 %v261, %v261
        %v270 = vmul.f32 %v262, %v262
        %v271 = vld [vmem:[#allocation5] sm:$0xff]
        %v272 = vld [vmem:[#allocation5 + $0x8] sm:$0xff]
        %v273 = vld [vmem:[#allocation5 + $0x10] sm:$0xff]
        %v274 = vld [vmem:[#allocation5 + $0x18] sm:$0xff]
        %v275 = vld [vmem:[#allocation5 + $0x20] sm:$0xff]
        %v276 = vld [vmem:[#allocation5 + $0x28] sm:$0xff]
        %v277 = vld [vmem:[#allocation5 + $0x30] sm:$0xff]
        %v278 = vld [vmem:[#allocation5 + $0x38] sm:$0xff]
        %v279 = vld [vmem:[#allocation5 + $0x40] sm:$0xff]
        %v280 = vld [vmem:[#allocation5 + $0x48] sm:$0xff]
        %v281 = vld [vmem:[#allocation5 + $0x50] sm:$0xff]
        %v282 = vld [vmem:[#allocation5 + $0x58] sm:$0xff]
        %v283 = vld [vmem:[#allocation5 + $0x60] sm:$0xff]
        %v284 = vld [vmem:[#allocation5 + $0x68] sm:$0xff]
        %v285 = vld [vmem:[#allocation5 + $0x70] sm:$0xff]
        %v286 = vld [vmem:[#allocation5 + $0x78] sm:$0xff]
        %v287 = vld [vmem:[%s213] sm:$0x1]
        %288 = vmatprep.subr.mxu0 0.0
        %v289 = vand.u32 %v286, 4294901760
        %290 = vmatpush1.msra.mxu0 %v289
        %291 = vmatprep.subr.mxu0 0.0
        %v292 = vand.u32 %v285, 4294901760
        %293 = vmatpush1.msra.mxu0 %v292
        %294 = vmatprep.subr.mxu0 0.0
        %v295 = vand.u32 %v284, 4294901760
        %296 = vmatpush1.msra.mxu0 %v295
        %297 = vmatprep.subr.mxu0 0.0
        %v298 = vand.u32 %v283, 4294901760
        %299 = vmatpush1.msra.mxu0 %v298
        %300 = vmatprep.subr.mxu0 0.0
        %v301 = vand.u32 %v282, 4294901760
        %302 = vmatpush1.msra.mxu0 %v301
        %303 = vmatprep.subr.mxu0 0.0
        %v304 = vand.u32 %v281, 4294901760
        %305 = vmatpush1.msra.mxu0 %v304
        %306 = vmatprep.subr.mxu0 0.0
        %v307 = vand.u32 %v280, 4294901760
        %308 = vmatpush1.msra.mxu0 %v307
        %309 = vmatprep.subr.mxu0 0.0
        %v310 = vand.u32 %v279, 4294901760
        %311 = vmatpush1.msra.mxu0 %v310
        %312 = vmatprep.subr.mxu0 0.0
        %v313 = vand.u32 %v278, 4294901760
        %314 = vmatpush1.msra.mxu0 %v313
        %315 = vmatprep.subr.mxu0 0.0
        %v316 = vand.u32 %v277, 4294901760
        %317 = vmatpush1.msra.mxu0 %v316
        %318 = vmatprep.subr.mxu0 0.0
        %v319 = vand.u32 %v276, 4294901760
        %320 = vmatpush1.msra.mxu0 %v319
        %321 = vmatprep.subr.mxu0 0.0
        %v322 = vand.u32 %v275, 4294901760
        %323 = vmatpush1.msra.mxu0 %v322
        %324 = vmatprep.subr.mxu0 0.0
        %v325 = vand.u32 %v274, 4294901760
        %326 = vmatpush1.msra.mxu0 %v325
        %327 = vmatprep.subr.mxu0 0.0
        %v328 = vand.u32 %v273, 4294901760
        %329 = vmatpush1.msra.mxu0 %v328
        %330 = vmatprep.subr.mxu0 0.0
        %v331 = vand.u32 %v272, 4294901760
        %332 = vmatpush1.msra.mxu0 %v331
        %333 = vmatprep.subr.mxu0 0.0
        %v334 = vand.u32 %v271, 4294901760
        %335 = vmatpush1.msra.mxu0 %v334
        %336 = vmatprep.subr.mxu0 0.0
        %337 = vmatpush2.msra.mxu0 0.0
        %338 = vmatprep.subr.mxu0 0.0
        %339 = vmatpush2.msra.mxu0 0.0
        %340 = vmatprep.subr.mxu0 0.0
        %341 = vmatpush2.msra.mxu0 0.0
        %342 = vmatprep.subr.mxu0 0.0
        %343 = vmatpush2.msra.mxu0 0.0
        %344 = vmatprep.subr.mxu0 0.0
        %345 = vmatpush2.msra.mxu0 0.0
        %346 = vmatprep.subr.mxu0 0.0
        %347 = vmatpush2.msra.mxu0 0.0
        %348 = vmatprep.subr.mxu0 0.0
        %349 = vmatpush2.msra.mxu0 0.0
        %350 = vmatprep.subr.mxu0 0.0
        %351 = vmatpush2.msra.mxu0 0.0
        %352 = vmatprep.subr.mxu0 0.0
        %353 = vmatpush2.msra.mxu0 0.0
        %354 = vmatprep.subr.mxu0 0.0
        %355 = vmatpush2.msra.mxu0 0.0
        %356 = vmatprep.subr.mxu0 0.0
        %357 = vmatpush2.msra.mxu0 0.0
        %358 = vmatprep.subr.mxu0 0.0
        %359 = vmatpush2.msra.mxu0 0.0
        %360 = vmatprep.subr.mxu0 0.0
        %361 = vmatpush2.msra.mxu0 0.0
        %362 = vmatprep.subr.mxu0 0.0
        %363 = vmatpush2.msra.mxu0 0.0
        %364 = vmatprep.subr.mxu0 0.0
        %365 = vmatpush2.msra.mxu0 0.0
        %366 = vmatprep.subr.mxu0 0.0
        %367 = vmatpush2.msra.mxu0 0.0
        %368 = vmatprep.mubr.f32.mxu0 0.0
        %v369 = vand.u32 %v263, 4294901760
        %v370 = vsub.f32 %v263, %v369
        %v371 = vand.u32 %v370, 4294901760
        %v372 = vsub.f32 %v370, %v371
        %v373 = vand.u32 %v372, 4294901760
        %374 = vmatmul.mubr.f32.gmra.mxu0 %v373
        %v375 = vpop.f32.mrf.mxu0
        %v376 = vadd.f32 1e-06, %v375
        %v377 = vpop.f32.mrf.mxu0
        %378 = vmatprep.mubr.f32.mxu0 0.0
        %v379 = vand.u32 %v264, 4294901760
        %v380 = vsub.f32 %v264, %v379
        %v381 = vand.u32 %v380, 4294901760
        %v382 = vsub.f32 %v380, %v381
        %v383 = vand.u32 %v382, 4294901760
        %384 = vmatmul.mubr.f32.gmra.mxu0 %v383
        %v385 = vpop.f32.mrf.mxu0
        %v386 = vadd.f32 1e-06, %v385
        %v387 = vpop.f32.mrf.mxu0
        %388 = vmatprep.mubr.f32.mxu0 0.0
        %v389 = vand.u32 %v265, 4294901760
        %v390 = vsub.f32 %v265, %v389
        %v391 = vand.u32 %v390, 4294901760
        %v392 = vsub.f32 %v390, %v391
        %v393 = vand.u32 %v392, 4294901760
        %394 = vmatmul.mubr.f32.gmra.mxu0 %v393
        %v395 = vpop.f32.mrf.mxu0
        %v396 = vadd.f32 1e-06, %v395
        %v397 = vpop.f32.mrf.mxu0
        %398 = vmatprep.mubr.f32.mxu0 0.0
        %v399 = vand.u32 %v266, 4294901760
        %v400 = vsub.f32 %v266, %v399
        %v401 = vand.u32 %v400, 4294901760
        %v402 = vsub.f32 %v400, %v401
        %v403 = vand.u32 %v402, 4294901760
        %404 = vmatmul.mubr.f32.gmra.mxu0 %v403
        %v405 = vpop.f32.mrf.mxu0
        %v406 = vadd.f32 1e-06, %v405
        %v407 = vpop.f32.mrf.mxu0
        %408 = vmatprep.mubr.f32.mxu0 0.0
        %v409 = vand.u32 %v267, 4294901760
        %v410 = vsub.f32 %v267, %v409
        %v411 = vand.u32 %v410, 4294901760
        %v412 = vsub.f32 %v410, %v411
        %v413 = vand.u32 %v412, 4294901760
        %414 = vmatmul.mubr.f32.gmra.mxu0 %v413
        %v415 = vpop.f32.mrf.mxu0
        %v416 = vadd.f32 1e-06, %v415
        %v417 = vpop.f32.mrf.mxu0
        %418 = vmatprep.mubr.f32.mxu0 0.0
        %v419 = vand.u32 %v268, 4294901760
        %v420 = vsub.f32 %v268, %v419
        %v421 = vand.u32 %v420, 4294901760
        %v422 = vsub.f32 %v420, %v421
        %v423 = vand.u32 %v422, 4294901760
        %424 = vmatmul.mubr.f32.gmra.mxu0 %v423
        %v425 = vpop.f32.mrf.mxu0
        %v426 = vadd.f32 1e-06, %v425
        %v427 = vpop.f32.mrf.mxu0
        %428 = vmatprep.mubr.f32.mxu0 0.0
        %v429 = vand.u32 %v269, 4294901760
        %v430 = vsub.f32 %v269, %v429
        %v431 = vand.u32 %v430, 4294901760
        %v432 = vsub.f32 %v430, %v431
        %v433 = vand.u32 %v432, 4294901760
        %434 = vmatmul.mubr.f32.gmra.mxu0 %v433
        %v435 = vpop.f32.mrf.mxu0
        %v436 = vadd.f32 1e-06, %v435
        %v437 = vpop.f32.mrf.mxu0
        %438 = vmatprep.mubr.f32.mxu0 0.0
        %v439 = vand.u32 %v270, 4294901760
        %v440 = vsub.f32 %v270, %v439
        %v441 = vand.u32 %v440, 4294901760
        %v442 = vsub.f32 %v440, %v441
        %v443 = vand.u32 %v442, 4294901760
        %444 = vmatmul.mubr.f32.gmra.mxu0 %v443
        %v445 = vpop.f32.mrf.mxu0
        %v446 = vadd.f32 1e-06, %v445
        %v447 = vpop.f32.mrf.mxu0
        %448 = vdwg.mxu0
        %449 = vmatprep.subr.mxu0 0.0
        %v450 = vand.u32 %v286, 4294901760
        %v451 = vsub.f32 %v286, %v450
        %v452 = vand.u32 %v451, 4294901760
        %v453 = vsub.f32 %v451, %v452
        %v454 = vand.u32 %v453, 4294901760
        %455 = vmatpush1.msra.mxu0 %v454
        %456 = vmatprep.subr.mxu0 0.0
        %v457 = vand.u32 %v285, 4294901760
        %v458 = vsub.f32 %v285, %v457
        %v459 = vand.u32 %v458, 4294901760
        %v460 = vsub.f32 %v458, %v459
        %v461 = vand.u32 %v460, 4294901760
        %462 = vmatpush1.msra.mxu0 %v461
        %463 = vmatprep.subr.mxu0 0.0
        %v464 = vand.u32 %v284, 4294901760
        %v465 = vsub.f32 %v284, %v464
        %v466 = vand.u32 %v465, 4294901760
        %v467 = vsub.f32 %v465, %v466
        %v468 = vand.u32 %v467, 4294901760
        %469 = vmatpush1.msra.mxu0 %v468
        %470 = vmatprep.subr.mxu0 0.0
        %v471 = vand.u32 %v283, 4294901760
        %v472 = vsub.f32 %v283, %v471
        %v473 = vand.u32 %v472, 4294901760
        %v474 = vsub.f32 %v472, %v473
        %v475 = vand.u32 %v474, 4294901760
        %476 = vmatpush1.msra.mxu0 %v475
        %477 = vmatprep.subr.mxu0 0.0
        %v478 = vand.u32 %v282, 4294901760
        %v479 = vsub.f32 %v282, %v478
        %v480 = vand.u32 %v479, 4294901760
        %v481 = vsub.f32 %v479, %v480
        %v482 = vand.u32 %v481, 4294901760
        %483 = vmatpush1.msra.mxu0 %v482
        %484 = vmatprep.subr.mxu0 0.0
        %v485 = vand.u32 %v281, 4294901760
        %v486 = vsub.f32 %v281, %v485
        %v487 = vand.u32 %v486, 4294901760
        %v488 = vsub.f32 %v486, %v487
        %v489 = vand.u32 %v488, 4294901760
        %490 = vmatpush1.msra.mxu0 %v489
        %491 = vmatprep.subr.mxu0 0.0
        %v492 = vand.u32 %v280, 4294901760
        %v493 = vsub.f32 %v280, %v492
        %v494 = vand.u32 %v493, 4294901760
        %v495 = vsub.f32 %v493, %v494
        %v496 = vand.u32 %v495, 4294901760
        %497 = vmatpush1.msra.mxu0 %v496
        %498 = vmatprep.subr.mxu0 0.0
        %v499 = vand.u32 %v279, 4294901760
        %v500 = vsub.f32 %v279, %v499
        %v501 = vand.u32 %v500, 4294901760
        %v502 = vsub.f32 %v500, %v501
        %v503 = vand.u32 %v502, 4294901760
        %504 = vmatpush1.msra.mxu0 %v503
        %505 = vmatprep.subr.mxu0 0.0
        %v506 = vand.u32 %v278, 4294901760
        %v507 = vsub.f32 %v278, %v506
        %v508 = vand.u32 %v507, 4294901760
        %v509 = vsub.f32 %v507, %v508
        %v510 = vand.u32 %v509, 4294901760
        %511 = vmatpush1.msra.mxu0 %v510
        %512 = vmatprep.subr.mxu0 0.0
        %v513 = vand.u32 %v277, 4294901760
        %v514 = vsub.f32 %v277, %v513
        %v515 = vand.u32 %v514, 4294901760
        %v516 = vsub.f32 %v514, %v515
        %v517 = vand.u32 %v516, 4294901760
        %518 = vmatpush1.msra.mxu0 %v517
        %519 = vmatprep.subr.mxu0 0.0
        %v520 = vand.u32 %v276, 4294901760
        %v521 = vsub.f32 %v276, %v520
        %v522 = vand.u32 %v521, 4294901760
        %v523 = vsub.f32 %v521, %v522
        %v524 = vand.u32 %v523, 4294901760
        %525 = vmatpush1.msra.mxu0 %v524
        %526 = vmatprep.subr.mxu0 0.0
        %v527 = vand.u32 %v275, 4294901760
        %v528 = vsub.f32 %v275, %v527
        %v529 = vand.u32 %v528, 4294901760
        %v530 = vsub.f32 %v528, %v529
        %v531 = vand.u32 %v530, 4294901760
        %532 = vmatpush1.msra.mxu0 %v531
        %533 = vmatprep.subr.mxu0 0.0
        %v534 = vand.u32 %v274, 4294901760
        %v535 = vsub.f32 %v274, %v534
        %v536 = vand.u32 %v535, 4294901760
        %v537 = vsub.f32 %v535, %v536
        %v538 = vand.u32 %v537, 4294901760
        %539 = vmatpush1.msra.mxu0 %v538
        %540 = vmatprep.subr.mxu0 0.0
        %v541 = vand.u32 %v273, 4294901760
        %v542 = vsub.f32 %v273, %v541
        %v543 = vand.u32 %v542, 4294901760
        %v544 = vsub.f32 %v542, %v543
        %v545 = vand.u32 %v544, 4294901760
        %546 = vmatpush1.msra.mxu0 %v545
        %547 = vmatprep.subr.mxu0 0.0
        %v548 = vand.u32 %v272, 4294901760
        %v549 = vsub.f32 %v272, %v548
        %v550 = vand.u32 %v549, 4294901760
        %v551 = vsub.f32 %v549, %v550
        %v552 = vand.u32 %v551, 4294901760
        %553 = vmatpush1.msra.mxu0 %v552
        %554 = vmatprep.subr.mxu0 0.0
        %v555 = vand.u32 %v271, 4294901760
        %v556 = vsub.f32 %v271, %v555
        %v557 = vand.u32 %v556, 4294901760
        %v558 = vsub.f32 %v556, %v557
        %v559 = vand.u32 %v558, 4294901760
        %560 = vmatpush1.msra.mxu0 %v559
        %561 = vmatprep.subr.mxu0 0.0
        %562 = vmatpush2.msra.mxu0 0.0
        %563 = vmatprep.subr.mxu0 0.0
        %564 = vmatpush2.msra.mxu0 0.0
        %565 = vmatprep.subr.mxu0 0.0
        %566 = vmatpush2.msra.mxu0 0.0
        %567 = vmatprep.subr.mxu0 0.0
        %568 = vmatpush2.msra.mxu0 0.0
        %569 = vmatprep.subr.mxu0 0.0
        %570 = vmatpush2.msra.mxu0 0.0
        %571 = vmatprep.subr.mxu0 0.0
        %572 = vmatpush2.msra.mxu0 0.0
        %573 = vmatprep.subr.mxu0 0.0
        %574 = vmatpush2.msra.mxu0 0.0
        %575 = vmatprep.subr.mxu0 0.0
        %576 = vmatpush2.msra.mxu0 0.0
        %577 = vmatprep.subr.mxu0 0.0
        %578 = vmatpush2.msra.mxu0 0.0
        %579 = vmatprep.subr.mxu0 0.0
        %580 = vmatpush2.msra.mxu0 0.0
        %581 = vmatprep.subr.mxu0 0.0
        %582 = vmatpush2.msra.mxu0 0.0
        %583 = vmatprep.subr.mxu0 0.0
        %584 = vmatpush2.msra.mxu0 0.0
        %585 = vmatprep.subr.mxu0 0.0
        %586 = vmatpush2.msra.mxu0 0.0
        %587 = vmatprep.subr.mxu0 0.0
        %588 = vmatpush2.msra.mxu0 0.0
        %589 = vmatprep.subr.mxu0 0.0
        %590 = vmatpush2.msra.mxu0 0.0
        %591 = vmatprep.subr.mxu0 0.0
        %592 = vmatpush2.msra.mxu0 0.0
        %593 = vmatprep.mubr.f32.mxu0 0.0
        %v594 = vand.u32 %v263, 4294901760
        %595 = vmatmul.mubr.f32.gmra.mxu0 %v594
        %v596 = vpop.f32.mrf.mxu0
        %v597 = vadd.f32 %v376, %v596
        %v598 = vpop.f32.mrf.mxu0
        %599 = vmatprep.mubr.f32.mxu0 0.0
        %v600 = vand.u32 %v264, 4294901760
        %601 = vmatmul.mubr.f32.gmra.mxu0 %v600
        %v602 = vpop.f32.mrf.mxu0
        %v603 = vadd.f32 %v386, %v602
        %v604 = vpop.f32.mrf.mxu0
        %605 = vmatprep.mubr.f32.mxu0 0.0
        %v606 = vand.u32 %v265, 4294901760
        %607 = vmatmul.mubr.f32.gmra.mxu0 %v606
        %v608 = vpop.f32.mrf.mxu0
        %v609 = vadd.f32 %v396, %v608
        %v610 = vpop.f32.mrf.mxu0
        %611 = vmatprep.mubr.f32.mxu0 0.0
        %v612 = vand.u32 %v266, 4294901760
        %613 = vmatmul.mubr.f32.gmra.mxu0 %v612
        %v614 = vpop.f32.mrf.mxu0
        %v615 = vadd.f32 %v406, %v614
        %v616 = vpop.f32.mrf.mxu0
        %617 = vmatprep.mubr.f32.mxu0 0.0
        %v618 = vand.u32 %v267, 4294901760
        %619 = vmatmul.mubr.f32.gmra.mxu0 %v618
        %v620 = vpop.f32.mrf.mxu0
        %v621 = vadd.f32 %v416, %v620
        %v622 = vpop.f32.mrf.mxu0
        %623 = vmatprep.mubr.f32.mxu0 0.0
        %v624 = vand.u32 %v268, 4294901760
        %625 = vmatmul.mubr.f32.gmra.mxu0 %v624
        %v626 = vpop.f32.mrf.mxu0
        %v627 = vadd.f32 %v426, %v626
        %v628 = vpop.f32.mrf.mxu0
        %629 = vmatprep.mubr.f32.mxu0 0.0
        %v630 = vand.u32 %v269, 4294901760
        %631 = vmatmul.mubr.f32.gmra.mxu0 %v630
        %v632 = vpop.f32.mrf.mxu0
        %v633 = vadd.f32 %v436, %v632
        %v634 = vpop.f32.mrf.mxu0
        %635 = vmatprep.mubr.f32.mxu0 0.0
        %v636 = vand.u32 %v270, 4294901760
        %637 = vmatmul.mubr.f32.gmra.mxu0 %v636
        %v638 = vpop.f32.mrf.mxu0
        %v639 = vadd.f32 %v446, %v638
        %v640 = vpop.f32.mrf.mxu0
        %641 = vdwg.mxu0
        %642 = vmatprep.subr.mxu0 0.0
        %v643 = vand.u32 %v286, 4294901760
        %v644 = vsub.f32 %v286, %v643
        %645 = vmatpush1.msra.mxu0 %v644
        %646 = vmatprep.subr.mxu0 0.0
        %v647 = vand.u32 %v285, 4294901760
        %v648 = vsub.f32 %v285, %v647
        %649 = vmatpush1.msra.mxu0 %v648
        %650 = vmatprep.subr.mxu0 0.0
        %v651 = vand.u32 %v284, 4294901760
        %v652 = vsub.f32 %v284, %v651
        %653 = vmatpush1.msra.mxu0 %v652
        %654 = vmatprep.subr.mxu0 0.0
        %v655 = vand.u32 %v283, 4294901760
        %v656 = vsub.f32 %v283, %v655
        %657 = vmatpush1.msra.mxu0 %v656
        %658 = vmatprep.subr.mxu0 0.0
        %v659 = vand.u32 %v282, 4294901760
        %v660 = vsub.f32 %v282, %v659
        %661 = vmatpush1.msra.mxu0 %v660
        %662 = vmatprep.subr.mxu0 0.0
        %v663 = vand.u32 %v281, 4294901760
        %v664 = vsub.f32 %v281, %v663
        %665 = vmatpush1.msra.mxu0 %v664
        %666 = vmatprep.subr.mxu0 0.0
        %v667 = vand.u32 %v280, 4294901760
        %v668 = vsub.f32 %v280, %v667
        %669 = vmatpush1.msra.mxu0 %v668
        %670 = vmatprep.subr.mxu0 0.0
        %v671 = vand.u32 %v279, 4294901760
        %v672 = vsub.f32 %v279, %v671
        %673 = vmatpush1.msra.mxu0 %v672
        %674 = vmatprep.subr.mxu0 0.0
        %v675 = vand.u32 %v278, 4294901760
        %v676 = vsub.f32 %v278, %v675
        %677 = vmatpush1.msra.mxu0 %v676
        %678 = vmatprep.subr.mxu0 0.0
        %v679 = vand.u32 %v277, 4294901760
        %v680 = vsub.f32 %v277, %v679
        %681 = vmatpush1.msra.mxu0 %v680
        %682 = vmatprep.subr.mxu0 0.0
        %v683 = vand.u32 %v276, 4294901760
        %v684 = vsub.f32 %v276, %v683
        %685 = vmatpush1.msra.mxu0 %v684
        %686 = vmatprep.subr.mxu0 0.0
        %v687 = vand.u32 %v275, 4294901760
        %v688 = vsub.f32 %v275, %v687
        %689 = vmatpush1.msra.mxu0 %v688
        %690 = vmatprep.subr.mxu0 0.0
        %v691 = vand.u32 %v274, 4294901760
        %v692 = vsub.f32 %v274, %v691
        %693 = vmatpush1.msra.mxu0 %v692
        %694 = vmatprep.subr.mxu0 0.0
        %v695 = vand.u32 %v273, 4294901760
        %v696 = vsub.f32 %v273, %v695
        %697 = vmatpush1.msra.mxu0 %v696
        %698 = vmatprep.subr.mxu0 0.0
        %v699 = vand.u32 %v272, 4294901760
        %v700 = vsub.f32 %v272, %v699
        %701 = vmatpush1.msra.mxu0 %v700
        %702 = vmatprep.subr.mxu0 0.0
        %v703 = vand.u32 %v271, 4294901760
        %v704 = vsub.f32 %v271, %v703
        %705 = vmatpush1.msra.mxu0 %v704
        %706 = vmatprep.subr.mxu0 0.0
        %707 = vmatpush2.msra.mxu0 0.0
        %708 = vmatprep.subr.mxu0 0.0
        %709 = vmatpush2.msra.mxu0 0.0
        %710 = vmatprep.subr.mxu0 0.0
        %711 = vmatpush2.msra.mxu0 0.0
        %712 = vmatprep.subr.mxu0 0.0
        %713 = vmatpush2.msra.mxu0 0.0
        %714 = vmatprep.subr.mxu0 0.0
        %715 = vmatpush2.msra.mxu0 0.0
        %716 = vmatprep.subr.mxu0 0.0
        %717 = vmatpush2.msra.mxu0 0.0
        %718 = vmatprep.subr.mxu0 0.0
        %719 = vmatpush2.msra.mxu0 0.0
        %720 = vmatprep.subr.mxu0 0.0
        %721 = vmatpush2.msra.mxu0 0.0
        %722 = vmatprep.subr.mxu0 0.0
        %723 = vmatpush2.msra.mxu0 0.0
        %724 = vmatprep.subr.mxu0 0.0
        %725 = vmatpush2.msra.mxu0 0.0
        %726 = vmatprep.subr.mxu0 0.0
        %727 = vmatpush2.msra.mxu0 0.0
        %728 = vmatprep.subr.mxu0 0.0
        %729 = vmatpush2.msra.mxu0 0.0
        %730 = vmatprep.subr.mxu0 0.0
        %731 = vmatpush2.msra.mxu0 0.0
        %732 = vmatprep.subr.mxu0 0.0
        %733 = vmatpush2.msra.mxu0 0.0
        %734 = vmatprep.subr.mxu0 0.0
        %735 = vmatpush2.msra.mxu0 0.0
        %736 = vmatprep.subr.mxu0 0.0
        %737 = vmatpush2.msra.mxu0 0.0
        %738 = vmatprep.mubr.f32.mxu0 0.0
        %v739 = vand.u32 %v263, 4294901760
        %v740 = vsub.f32 %v263, %v739
        %741 = vmatmul.mubr.f32.gmra.mxu0 %v740
        %v742 = vpop.f32.mrf.mxu0
        %v743 = vadd.f32 %v597, %v742
        %v744 = vpop.f32.mrf.mxu0
        %745 = vmatprep.mubr.f32.mxu0 0.0
        %v746 = vand.u32 %v264, 4294901760
        %v747 = vsub.f32 %v264, %v746
        %748 = vmatmul.mubr.f32.gmra.mxu0 %v747
        %v749 = vpop.f32.mrf.mxu0
        %v750 = vadd.f32 %v603, %v749
        %v751 = vpop.f32.mrf.mxu0
        %752 = vmatprep.mubr.f32.mxu0 0.0
        %v753 = vand.u32 %v265, 4294901760
        %v754 = vsub.f32 %v265, %v753
        %755 = vmatmul.mubr.f32.gmra.mxu0 %v754
        %v756 = vpop.f32.mrf.mxu0
        %v757 = vadd.f32 %v609, %v756
        %v758 = vpop.f32.mrf.mxu0
        %759 = vmatprep.mubr.f32.mxu0 0.0
        %v760 = vand.u32 %v266, 4294901760
        %v761 = vsub.f32 %v266, %v760
        %762 = vmatmul.mubr.f32.gmra.mxu0 %v761
        %v763 = vpop.f32.mrf.mxu0
        %v764 = vadd.f32 %v615, %v763
        %v765 = vpop.f32.mrf.mxu0
        %766 = vmatprep.mubr.f32.mxu0 0.0
        %v767 = vand.u32 %v267, 4294901760
        %v768 = vsub.f32 %v267, %v767
        %769 = vmatmul.mubr.f32.gmra.mxu0 %v768
        %v770 = vpop.f32.mrf.mxu0
        %v771 = vadd.f32 %v621, %v770
        %v772 = vpop.f32.mrf.mxu0
        %773 = vmatprep.mubr.f32.mxu0 0.0
        %v774 = vand.u32 %v268, 4294901760
        %v775 = vsub.f32 %v268, %v774
        %776 = vmatmul.mubr.f32.gmra.mxu0 %v775
        %v777 = vpop.f32.mrf.mxu0
        %v778 = vadd.f32 %v627, %v777
        %v779 = vpop.f32.mrf.mxu0
        %780 = vmatprep.mubr.f32.mxu0 0.0
        %v781 = vand.u32 %v269, 4294901760
        %v782 = vsub.f32 %v269, %v781
        %783 = vmatmul.mubr.f32.gmra.mxu0 %v782
        %v784 = vpop.f32.mrf.mxu0
        %v785 = vadd.f32 %v633, %v784
        %v786 = vpop.f32.mrf.mxu0
        %787 = vmatprep.mubr.f32.mxu0 0.0
        %v788 = vand.u32 %v270, 4294901760
        %v789 = vsub.f32 %v270, %v788
        %790 = vmatmul.mubr.f32.gmra.mxu0 %v789
        %v791 = vpop.f32.mrf.mxu0
        %v792 = vadd.f32 %v639, %v791
        %v793 = vpop.f32.mrf.mxu0
        %794 = vdwg.mxu0
        %795 = vmatprep.subr.mxu0 0.0
        %v796 = vand.u32 %v286, 4294901760
        %797 = vmatpush1.msra.mxu0 %v796
        %798 = vmatprep.subr.mxu0 0.0
        %v799 = vand.u32 %v285, 4294901760
        %800 = vmatpush1.msra.mxu0 %v799
        %801 = vmatprep.subr.mxu0 0.0
        %v802 = vand.u32 %v284, 4294901760
        %803 = vmatpush1.msra.mxu0 %v802
        %804 = vmatprep.subr.mxu0 0.0
        %v805 = vand.u32 %v283, 4294901760
        %806 = vmatpush1.msra.mxu0 %v805
        %807 = vmatprep.subr.mxu0 0.0
        %v808 = vand.u32 %v282, 4294901760
        %809 = vmatpush1.msra.mxu0 %v808
        %810 = vmatprep.subr.mxu0 0.0
        %v811 = vand.u32 %v281, 4294901760
        %812 = vmatpush1.msra.mxu0 %v811
        %813 = vmatprep.subr.mxu0 0.0
        %v814 = vand.u32 %v280, 4294901760
        %815 = vmatpush1.msra.mxu0 %v814
        %816 = vmatprep.subr.mxu0 0.0
        %v817 = vand.u32 %v279, 4294901760
        %818 = vmatpush1.msra.mxu0 %v817
        %819 = vmatprep.subr.mxu0 0.0
        %v820 = vand.u32 %v278, 4294901760
        %821 = vmatpush1.msra.mxu0 %v820
        %822 = vmatprep.subr.mxu0 0.0
        %v823 = vand.u32 %v277, 4294901760
        %824 = vmatpush1.msra.mxu0 %v823
        %825 = vmatprep.subr.mxu0 0.0
        %v826 = vand.u32 %v276, 4294901760
        %827 = vmatpush1.msra.mxu0 %v826
        %828 = vmatprep.subr.mxu0 0.0
        %v829 = vand.u32 %v275, 4294901760
        %830 = vmatpush1.msra.mxu0 %v829
        %831 = vmatprep.subr.mxu0 0.0
        %v832 = vand.u32 %v274, 4294901760
        %833 = vmatpush1.msra.mxu0 %v832
        %834 = vmatprep.subr.mxu0 0.0
        %v835 = vand.u32 %v273, 4294901760
        %836 = vmatpush1.msra.mxu0 %v835
        %837 = vmatprep.subr.mxu0 0.0
        %v838 = vand.u32 %v272, 4294901760
        %839 = vmatpush1.msra.mxu0 %v838
        %840 = vmatprep.subr.mxu0 0.0
        %v841 = vand.u32 %v271, 4294901760
        %842 = vmatpush1.msra.mxu0 %v841
        %843 = vmatprep.subr.mxu0 0.0
        %844 = vmatpush2.msra.mxu0 0.0
        %845 = vmatprep.subr.mxu0 0.0
        %846 = vmatpush2.msra.mxu0 0.0
        %847 = vmatprep.subr.mxu0 0.0
        %848 = vmatpush2.msra.mxu0 0.0
        %849 = vmatprep.subr.mxu0 0.0
        %850 = vmatpush2.msra.mxu0 0.0
        %851 = vmatprep.subr.mxu0 0.0
        %852 = vmatpush2.msra.mxu0 0.0
        %853 = vmatprep.subr.mxu0 0.0
        %854 = vmatpush2.msra.mxu0 0.0
        %855 = vmatprep.subr.mxu0 0.0
        %856 = vmatpush2.msra.mxu0 0.0
        %857 = vmatprep.subr.mxu0 0.0
        %858 = vmatpush2.msra.mxu0 0.0
        %859 = vmatprep.subr.mxu0 0.0
        %860 = vmatpush2.msra.mxu0 0.0
        %861 = vmatprep.subr.mxu0 0.0
        %862 = vmatpush2.msra.mxu0 0.0
        %863 = vmatprep.subr.mxu0 0.0
        %864 = vmatpush2.msra.mxu0 0.0
        %865 = vmatprep.subr.mxu0 0.0
        %866 = vmatpush2.msra.mxu0 0.0
        %867 = vmatprep.subr.mxu0 0.0
        %868 = vmatpush2.msra.mxu0 0.0
        %869 = vmatprep.subr.mxu0 0.0
        %870 = vmatpush2.msra.mxu0 0.0
        %871 = vmatprep.subr.mxu0 0.0
        %872 = vmatpush2.msra.mxu0 0.0
        %873 = vmatprep.subr.mxu0 0.0
        %874 = vmatpush2.msra.mxu0 0.0
        %875 = vmatprep.mubr.f32.mxu0 0.0
        %v876 = vand.u32 %v263, 4294901760
        %v877 = vsub.f32 %v263, %v876
        %v878 = vand.u32 %v877, 4294901760
        %879 = vmatmul.mubr.f32.gmra.mxu0 %v878
        %v880 = vpop.f32.mrf.mxu0
        %v881 = vadd.f32 %v743, %v880
        %v882 = vpop.f32.mrf.mxu0
        %883 = vmatprep.mubr.f32.mxu0 0.0
        %v884 = vand.u32 %v264, 4294901760
        %v885 = vsub.f32 %v264, %v884
        %v886 = vand.u32 %v885, 4294901760
        %887 = vmatmul.mubr.f32.gmra.mxu0 %v886
        %v888 = vpop.f32.mrf.mxu0
        %v889 = vadd.f32 %v750, %v888
        %v890 = vpop.f32.mrf.mxu0
        %891 = vmatprep.mubr.f32.mxu0 0.0
        %v892 = vand.u32 %v265, 4294901760
        %v893 = vsub.f32 %v265, %v892
        %v894 = vand.u32 %v893, 4294901760
        %895 = vmatmul.mubr.f32.gmra.mxu0 %v894
        %v896 = vpop.f32.mrf.mxu0
        %v897 = vadd.f32 %v757, %v896
        %v898 = vpop.f32.mrf.mxu0
        %899 = vmatprep.mubr.f32.mxu0 0.0
        %v900 = vand.u32 %v266, 4294901760
        %v901 = vsub.f32 %v266, %v900
        %v902 = vand.u32 %v901, 4294901760
        %903 = vmatmul.mubr.f32.gmra.mxu0 %v902
        %v904 = vpop.f32.mrf.mxu0
        %v905 = vadd.f32 %v764, %v904
        %v906 = vpop.f32.mrf.mxu0
        %907 = vmatprep.mubr.f32.mxu0 0.0
        %v908 = vand.u32 %v267, 4294901760
        %v909 = vsub.f32 %v267, %v908
        %v910 = vand.u32 %v909, 4294901760
        %911 = vmatmul.mubr.f32.gmra.mxu0 %v910
        %v912 = vpop.f32.mrf.mxu0
        %v913 = vadd.f32 %v771, %v912
        %v914 = vpop.f32.mrf.mxu0
        %915 = vmatprep.mubr.f32.mxu0 0.0
        %v916 = vand.u32 %v268, 4294901760
        %v917 = vsub.f32 %v268, %v916
        %v918 = vand.u32 %v917, 4294901760
        %919 = vmatmul.mubr.f32.gmra.mxu0 %v918
        %v920 = vpop.f32.mrf.mxu0
        %v921 = vadd.f32 %v778, %v920
        %v922 = vpop.f32.mrf.mxu0
        %923 = vmatprep.mubr.f32.mxu0 0.0
        %v924 = vand.u32 %v269, 4294901760
        %v925 = vsub.f32 %v269, %v924
        %v926 = vand.u32 %v925, 4294901760
        %927 = vmatmul.mubr.f32.gmra.mxu0 %v926
        %v928 = vpop.f32.mrf.mxu0
        %v929 = vadd.f32 %v785, %v928
        %v930 = vpop.f32.mrf.mxu0
        %931 = vmatprep.mubr.f32.mxu0 0.0
        %v932 = vand.u32 %v270, 4294901760
        %v933 = vsub.f32 %v270, %v932
        %v934 = vand.u32 %v933, 4294901760
        %935 = vmatmul.mubr.f32.gmra.mxu0 %v934
        %v936 = vpop.f32.mrf.mxu0
        %v937 = vadd.f32 %v792, %v936
        %v938 = vpop.f32.mrf.mxu0
        %939 = vdwg.mxu0
        %940 = vmatprep.subr.mxu0 0.0
        %v941 = vand.u32 %v286, 4294901760
        %v942 = vsub.f32 %v286, %v941
        %v943 = vand.u32 %v942, 4294901760
        %944 = vmatpush1.msra.mxu0 %v943
        %945 = vmatprep.subr.mxu0 0.0
        %v946 = vand.u32 %v285, 4294901760
        %v947 = vsub.f32 %v285, %v946
        %v948 = vand.u32 %v947, 4294901760
        %949 = vmatpush1.msra.mxu0 %v948
        %950 = vmatprep.subr.mxu0 0.0
        %v951 = vand.u32 %v284, 4294901760
        %v952 = vsub.f32 %v284, %v951
        %v953 = vand.u32 %v952, 4294901760
        %954 = vmatpush1.msra.mxu0 %v953
        %955 = vmatprep.subr.mxu0 0.0
        %v956 = vand.u32 %v283, 4294901760
        %v957 = vsub.f32 %v283, %v956
        %v958 = vand.u32 %v957, 4294901760
        %959 = vmatpush1.msra.mxu0 %v958
        %960 = vmatprep.subr.mxu0 0.0
        %v961 = vand.u32 %v282, 4294901760
        %v962 = vsub.f32 %v282, %v961
        %v963 = vand.u32 %v962, 4294901760
        %964 = vmatpush1.msra.mxu0 %v963
        %965 = vmatprep.subr.mxu0 0.0
        %v966 = vand.u32 %v281, 4294901760
        %v967 = vsub.f32 %v281, %v966
        %v968 = vand.u32 %v967, 4294901760
        %969 = vmatpush1.msra.mxu0 %v968
        %970 = vmatprep.subr.mxu0 0.0
        %v971 = vand.u32 %v280, 4294901760
        %v972 = vsub.f32 %v280, %v971
        %v973 = vand.u32 %v972, 4294901760
        %974 = vmatpush1.msra.mxu0 %v973
        %975 = vmatprep.subr.mxu0 0.0
        %v976 = vand.u32 %v279, 4294901760
        %v977 = vsub.f32 %v279, %v976
        %v978 = vand.u32 %v977, 4294901760
        %979 = vmatpush1.msra.mxu0 %v978
        %980 = vmatprep.subr.mxu0 0.0
        %v981 = vand.u32 %v278, 4294901760
        %v982 = vsub.f32 %v278, %v981
        %v983 = vand.u32 %v982, 4294901760
        %984 = vmatpush1.msra.mxu0 %v983
        %985 = vmatprep.subr.mxu0 0.0
        %v986 = vand.u32 %v277, 4294901760
        %v987 = vsub.f32 %v277, %v986
        %v988 = vand.u32 %v987, 4294901760
        %989 = vmatpush1.msra.mxu0 %v988
        %990 = vmatprep.subr.mxu0 0.0
        %v991 = vand.u32 %v276, 4294901760
        %v992 = vsub.f32 %v276, %v991
        %v993 = vand.u32 %v992, 4294901760
        %994 = vmatpush1.msra.mxu0 %v993
        %995 = vmatprep.subr.mxu0 0.0
        %v996 = vand.u32 %v275, 4294901760
        %v997 = vsub.f32 %v275, %v996
        %v998 = vand.u32 %v997, 4294901760
        %999 = vmatpush1.msra.mxu0 %v998
        %1000 = vmatprep.subr.mxu0 0.0
        %v1001 = vand.u32 %v274, 4294901760
        %v1002 = vsub.f32 %v274, %v1001
        %v1003 = vand.u32 %v1002, 4294901760
        %1004 = vmatpush1.msra.mxu0 %v1003
        %1005 = vmatprep.subr.mxu0 0.0
        %v1006 = vand.u32 %v273, 4294901760
        %v1007 = vsub.f32 %v273, %v1006
        %v1008 = vand.u32 %v1007, 4294901760
        %1009 = vmatpush1.msra.mxu0 %v1008
        %1010 = vmatprep.subr.mxu0 0.0
        %v1011 = vand.u32 %v272, 4294901760
        %v1012 = vsub.f32 %v272, %v1011
        %v1013 = vand.u32 %v1012, 4294901760
        %1014 = vmatpush1.msra.mxu0 %v1013
        %1015 = vmatprep.subr.mxu0 0.0
        %v1016 = vand.u32 %v271, 4294901760
        %v1017 = vsub.f32 %v271, %v1016
        %v1018 = vand.u32 %v1017, 4294901760
        %1019 = vmatpush1.msra.mxu0 %v1018
        %1020 = vmatprep.subr.mxu0 0.0
        %1021 = vmatpush2.msra.mxu0 0.0
        %1022 = vmatprep.subr.mxu0 0.0
        %1023 = vmatpush2.msra.mxu0 0.0
        %1024 = vmatprep.subr.mxu0 0.0
        %1025 = vmatpush2.msra.mxu0 0.0
        %1026 = vmatprep.subr.mxu0 0.0
        %1027 = vmatpush2.msra.mxu0 0.0
        %1028 = vmatprep.subr.mxu0 0.0
        %1029 = vmatpush2.msra.mxu0 0.0
        %1030 = vmatprep.subr.mxu0 0.0
        %1031 = vmatpush2.msra.mxu0 0.0
        %1032 = vmatprep.subr.mxu0 0.0
        %1033 = vmatpush2.msra.mxu0 0.0
        %1034 = vmatprep.subr.mxu0 0.0
        %1035 = vmatpush2.msra.mxu0 0.0
        %1036 = vmatprep.subr.mxu0 0.0
        %1037 = vmatpush2.msra.mxu0 0.0
        %1038 = vmatprep.subr.mxu0 0.0
        %1039 = vmatpush2.msra.mxu0 0.0
        %1040 = vmatprep.subr.mxu0 0.0
        %1041 = vmatpush2.msra.mxu0 0.0
        %1042 = vmatprep.subr.mxu0 0.0
        %1043 = vmatpush2.msra.mxu0 0.0
        %1044 = vmatprep.subr.mxu0 0.0
        %1045 = vmatpush2.msra.mxu0 0.0
        %1046 = vmatprep.subr.mxu0 0.0
        %1047 = vmatpush2.msra.mxu0 0.0
        %1048 = vmatprep.subr.mxu0 0.0
        %1049 = vmatpush2.msra.mxu0 0.0
        %1050 = vmatprep.subr.mxu0 0.0
        %1051 = vmatpush2.msra.mxu0 0.0
        %1052 = vmatprep.mubr.f32.mxu0 0.0
        %v1053 = vand.u32 %v263, 4294901760
        %1054 = vmatmul.mubr.f32.gmra.mxu0 %v1053
        %v1055 = vpop.f32.mrf.mxu0
        %v1056 = vadd.f32 %v881, %v1055
        %v1057 = vpop.f32.mrf.mxu0
        %1058 = vmatprep.mubr.f32.mxu0 0.0
        %v1059 = vand.u32 %v264, 4294901760
        %1060 = vmatmul.mubr.f32.gmra.mxu0 %v1059
        %v1061 = vpop.f32.mrf.mxu0
        %v1062 = vadd.f32 %v889, %v1061
        %v1063 = vpop.f32.mrf.mxu0
        %1064 = vmatprep.mubr.f32.mxu0 0.0
        %v1065 = vand.u32 %v265, 4294901760
        %1066 = vmatmul.mubr.f32.gmra.mxu0 %v1065
        %v1067 = vpop.f32.mrf.mxu0
        %v1068 = vadd.f32 %v897, %v1067
        %v1069 = vpop.f32.mrf.mxu0
        %1070 = vmatprep.mubr.f32.mxu0 0.0
        %v1071 = vand.u32 %v266, 4294901760
        %1072 = vmatmul.mubr.f32.gmra.mxu0 %v1071
        %v1073 = vpop.f32.mrf.mxu0
        %v1074 = vadd.f32 %v905, %v1073
        %v1075 = vpop.f32.mrf.mxu0
        %1076 = vmatprep.mubr.f32.mxu0 0.0
        %v1077 = vand.u32 %v267, 4294901760
        %1078 = vmatmul.mubr.f32.gmra.mxu0 %v1077
        %v1079 = vpop.f32.mrf.mxu0
        %v1080 = vadd.f32 %v913, %v1079
        %v1081 = vpop.f32.mrf.mxu0
        %1082 = vmatprep.mubr.f32.mxu0 0.0
        %v1083 = vand.u32 %v268, 4294901760
        %1084 = vmatmul.mubr.f32.gmra.mxu0 %v1083
        %v1085 = vpop.f32.mrf.mxu0
        %v1086 = vadd.f32 %v921, %v1085
        %v1087 = vpop.f32.mrf.mxu0
        %1088 = vmatprep.mubr.f32.mxu0 0.0
        %v1089 = vand.u32 %v269, 4294901760
        %1090 = vmatmul.mubr.f32.gmra.mxu0 %v1089
        %v1091 = vpop.f32.mrf.mxu0
        %v1092 = vadd.f32 %v929, %v1091
        %v1093 = vpop.f32.mrf.mxu0
        %1094 = vmatprep.mubr.f32.mxu0 0.0
        %v1095 = vand.u32 %v270, 4294901760
        %1096 = vmatmul.mubr.f32.gmra.mxu0 %v1095
        %v1097 = vpop.f32.mrf.mxu0
        %v1098 = vadd.f32 %v937, %v1097
        %v1099 = vpop.f32.mrf.mxu0
        %1100 = vdwg.mxu0
        %1101 = vmatprep.subr.mxu0 0.0
        %v1102 = vand.u32 %v286, 4294901760
        %1103 = vmatpush1.msra.mxu0 %v1102
        %1104 = vmatprep.subr.mxu0 0.0
        %v1105 = vand.u32 %v285, 4294901760
        %1106 = vmatpush1.msra.mxu0 %v1105
        %1107 = vmatprep.subr.mxu0 0.0
        %v1108 = vand.u32 %v284, 4294901760
        %1109 = vmatpush1.msra.mxu0 %v1108
        %1110 = vmatprep.subr.mxu0 0.0
        %v1111 = vand.u32 %v283, 4294901760
        %1112 = vmatpush1.msra.mxu0 %v1111
        %1113 = vmatprep.subr.mxu0 0.0
        %v1114 = vand.u32 %v282, 4294901760
        %1115 = vmatpush1.msra.mxu0 %v1114
        %1116 = vmatprep.subr.mxu0 0.0
        %v1117 = vand.u32 %v281, 4294901760
        %1118 = vmatpush1.msra.mxu0 %v1117
        %1119 = vmatprep.subr.mxu0 0.0
        %v1120 = vand.u32 %v280, 4294901760
        %1121 = vmatpush1.msra.mxu0 %v1120
        %1122 = vmatprep.subr.mxu0 0.0
        %v1123 = vand.u32 %v279, 4294901760
        %1124 = vmatpush1.msra.mxu0 %v1123
        %1125 = vmatprep.subr.mxu0 0.0
        %v1126 = vand.u32 %v278, 4294901760
        %1127 = vmatpush1.msra.mxu0 %v1126
        %1128 = vmatprep.subr.mxu0 0.0
        %v1129 = vand.u32 %v277, 4294901760
        %1130 = vmatpush1.msra.mxu0 %v1129
        %1131 = vmatprep.subr.mxu0 0.0
        %v1132 = vand.u32 %v276, 4294901760
        %1133 = vmatpush1.msra.mxu0 %v1132
        %1134 = vmatprep.subr.mxu0 0.0
        %v1135 = vand.u32 %v275, 4294901760
        %1136 = vmatpush1.msra.mxu0 %v1135
        %1137 = vmatprep.subr.mxu0 0.0
        %v1138 = vand.u32 %v274, 4294901760
        %1139 = vmatpush1.msra.mxu0 %v1138
        %1140 = vmatprep.subr.mxu0 0.0
        %v1141 = vand.u32 %v273, 4294901760
        %1142 = vmatpush1.msra.mxu0 %v1141
        %1143 = vmatprep.subr.mxu0 0.0
        %v1144 = vand.u32 %v272, 4294901760
        %1145 = vmatpush1.msra.mxu0 %v1144
        %1146 = vmatprep.subr.mxu0 0.0
        %v1147 = vand.u32 %v271, 4294901760
        %1148 = vmatpush1.msra.mxu0 %v1147
        %1149 = vmatprep.subr.mxu0 0.0
        %1150 = vmatpush2.msra.mxu0 0.0
        %1151 = vmatprep.subr.mxu0 0.0
        %1152 = vmatpush2.msra.mxu0 0.0
        %1153 = vmatprep.subr.mxu0 0.0
        %1154 = vmatpush2.msra.mxu0 0.0
        %1155 = vmatprep.subr.mxu0 0.0
        %1156 = vmatpush2.msra.mxu0 0.0
        %1157 = vmatprep.subr.mxu0 0.0
        %1158 = vmatpush2.msra.mxu0 0.0
        %1159 = vmatprep.subr.mxu0 0.0
        %1160 = vmatpush2.msra.mxu0 0.0
        %1161 = vmatprep.subr.mxu0 0.0
        %1162 = vmatpush2.msra.mxu0 0.0
        %1163 = vmatprep.subr.mxu0 0.0
        %1164 = vmatpush2.msra.mxu0 0.0
        %1165 = vmatprep.subr.mxu0 0.0
        %1166 = vmatpush2.msra.mxu0 0.0
        %1167 = vmatprep.subr.mxu0 0.0
        %1168 = vmatpush2.msra.mxu0 0.0
        %1169 = vmatprep.subr.mxu0 0.0
        %1170 = vmatpush2.msra.mxu0 0.0
        %1171 = vmatprep.subr.mxu0 0.0
        %1172 = vmatpush2.msra.mxu0 0.0
        %1173 = vmatprep.subr.mxu0 0.0
        %1174 = vmatpush2.msra.mxu0 0.0
        %1175 = vmatprep.subr.mxu0 0.0
        %1176 = vmatpush2.msra.mxu0 0.0
        %1177 = vmatprep.subr.mxu0 0.0
        %1178 = vmatpush2.msra.mxu0 0.0
        %1179 = vmatprep.subr.mxu0 0.0
        %1180 = vmatpush2.msra.mxu0 0.0
        %1181 = vmatprep.mubr.f32.mxu0 0.0
        %v1182 = vand.u32 %v263, 4294901760
        %1183 = vmatmul.mubr.f32.gmra.mxu0 %v1182
        %v1184 = vpop.f32.mrf.mxu0
        %v1185 = vadd.f32 %v1056, %v1184
        %v1186 = vpop.f32.mrf.mxu0
        %1187 = vmatprep.mubr.f32.mxu0 0.0
        %v1188 = vand.u32 %v264, 4294901760
        %1189 = vmatmul.mubr.f32.gmra.mxu0 %v1188
        %v1190 = vpop.f32.mrf.mxu0
        %v1191 = vadd.f32 %v1062, %v1190
        %v1192 = vpop.f32.mrf.mxu0
        %1193 = vmatprep.mubr.f32.mxu0 0.0
        %v1194 = vand.u32 %v265, 4294901760
        %1195 = vmatmul.mubr.f32.gmra.mxu0 %v1194
        %v1196 = vpop.f32.mrf.mxu0
        %v1197 = vadd.f32 %v1068, %v1196
        %v1198 = vpop.f32.mrf.mxu0
        %1199 = vmatprep.mubr.f32.mxu0 0.0
        %v1200 = vand.u32 %v266, 4294901760
        %1201 = vmatmul.mubr.f32.gmra.mxu0 %v1200
        %v1202 = vpop.f32.mrf.mxu0
        %v1203 = vadd.f32 %v1074, %v1202
        %v1204 = vpop.f32.mrf.mxu0
        %1205 = vmatprep.mubr.f32.mxu0 0.0
        %v1206 = vand.u32 %v267, 4294901760
        %1207 = vmatmul.mubr.f32.gmra.mxu0 %v1206
        %v1208 = vpop.f32.mrf.mxu0
        %v1209 = vadd.f32 %v1080, %v1208
        %v1210 = vpop.f32.mrf.mxu0
        %1211 = vmatprep.mubr.f32.mxu0 0.0
        %v1212 = vand.u32 %v268, 4294901760
        %1213 = vmatmul.mubr.f32.gmra.mxu0 %v1212
        %v1214 = vpop.f32.mrf.mxu0
        %v1215 = vadd.f32 %v1086, %v1214
        %v1216 = vpop.f32.mrf.mxu0
        %1217 = vmatprep.mubr.f32.mxu0 0.0
        %v1218 = vand.u32 %v269, 4294901760
        %1219 = vmatmul.mubr.f32.gmra.mxu0 %v1218
        %v1220 = vpop.f32.mrf.mxu0
        %v1221 = vadd.f32 %v1092, %v1220
        %v1222 = vpop.f32.mrf.mxu0
        %1223 = vmatprep.mubr.f32.mxu0 0.0
        %v1224 = vand.u32 %v270, 4294901760
        %1225 = vmatmul.mubr.f32.gmra.mxu0 %v1224
        %v1226 = vpop.f32.mrf.mxu0
        %v1227 = vadd.f32 %v1098, %v1226
        %v1228 = vpop.f32.mrf.mxu0
        %1229 = vdwg.mxu0
        %v1230 = vrsqrt.pop %v1185
        %v1231 = vrsqrt.pop %v1191
        %v1232 = vrsqrt.pop %v1197
        %v1233 = vrsqrt.pop %v1203
        %v1234 = vrsqrt.pop %v1209
        %v1235 = vrsqrt.pop %v1215
        %v1236 = vrsqrt.pop %v1221
        %v1237 = vrsqrt.pop %v1227
        %v1239 = vlaneseq
        %v1240 = vshrl.u32 %v1239, 7
        %v1241 = vsub.s32 0, %v1240
        %v1242 = vrot.slane %v287, %v1241
        %v1244 = vmul.f32 %v1242, %v1230
        %v1245 = vmul.f32 %v1242, %v1231
        %v1246 = vmul.f32 %v1242, %v1232
        %v1247 = vmul.f32 %v1242, %v1233
        %v1248 = vmul.f32 %v1242, %v1234
        %v1249 = vmul.f32 %v1242, %v1235
        %v1250 = vmul.f32 %v1242, %v1236
        %v1251 = vmul.f32 %v1242, %v1237
        %v1252 = vmul.f32 %v255, %v1244
        %v1253 = vmul.f32 %v256, %v1245
        %v1254 = vmul.f32 %v257, %v1246
        %v1255 = vmul.f32 %v258, %v1247
        %v1256 = vmul.f32 %v259, %v1248
        %v1257 = vmul.f32 %v260, %v1249
        %v1258 = vmul.f32 %v261, %v1250
        %v1259 = vmul.f32 %v262, %v1251
        %1260 = vst [vmem:[%s252] sm:$0xff] %v1252
        %1261 = vst [vmem:[%s252 + $0x8] sm:$0xff] %v1253
        %1262 = vst [vmem:[%s252 + $0x10] sm:$0xff] %v1254
        %1263 = vst [vmem:[%s252 + $0x18] sm:$0xff] %v1255
        %1264 = vst [vmem:[%s252 + $0x20] sm:$0xff] %v1256
        %1265 = vst [vmem:[%s252 + $0x28] sm:$0xff] %v1257
        %1266 = vst [vmem:[%s252 + $0x30] sm:$0xff] %v1258
        %1267 = vst [vmem:[%s252 + $0x38] sm:$0xff] %v1259
        %s1268 = sand.u32 %s118, 1
        %s1269 = scalar_lea.sflag [#allocation4], %s1268
        %s1270 = sand.u32 %s118, 1
        %s1271 = smul.addr %s1270, 64
        %s1272 = scalar_lea.vmem [#allocation8], %s1271
        // Predicated region
        $region45: #{tpu_custom_call.1} parent=31 // pred_check
          %p1273 = pneg %p128
        $region46: #{tpu_custom_call.1} parent=31 // pred_check_branch
          %1275 = sbr.rel (%p1273) target = $region48
        $region47: #{tpu_custom_call.1} parent=31 // pred_region
          %s1276 = smul.u32 8, %s26
          %s1278 = ssub.s32 1024, 1024
          %1279 = vsyncadd %s1269, %s1278
          %s1280 = smul.addr %s25, 8
          %s1281 = sadd.s32 %s1276, %s1280
          %s1282 = smul.addr %s1281, 128
          %s1283 = scalar_lea.hbm %s3, %s1282
          %s1284 = sshll.u32 %s1272, 4
          %s1285 = int_to_ptr.vmem [resolvable:$true] %s1284
          %1290 = dma.vmem_to_hbm [thread:$0]  %s1285, 1024, %s1283, %s1269, 128, 128, 8
        $region48: #{tpu_custom_call.1} parent=31 // pred_fallthru
          _
      $region32: #{tpu_custom_call.1} parent=5 // pred_fallthru
        _
      %p1291 = scmp.le.s32.totalorder 2, %s16
      // Predicated region
      $region49: #{tpu_custom_call.1} parent=5 // pred_check
        %p1292 = pneg %p1291
      $region50: #{tpu_custom_call.1} parent=5 // pred_check_branch
        %1294 = sbr.rel (%p1292) target = $region52
      $region51: #{tpu_custom_call.1} parent=5 // pred_region
        %s1295 = ssub.s32 %s16, 2
        // Predicated region
        $region53: #{tpu_custom_call.1} parent=51 // pred_check
          %p1296 = pneg %p134
        $region54: #{tpu_custom_call.1} parent=51 // pred_check_branch
          %1298 = sbr.rel (%p1296) target = $region56
        $region55: #{tpu_custom_call.1} parent=51 // pred_region
          %s1299 = sand.u32 %s119, 1
          %s1300 = scalar_lea.sflag [#allocation4], %s1299
          %s1301 = sand.u32 %s119, 1
          %s1302 = smul.addr %s1301, 64
          %s1303 = scalar_lea.vmem [#allocation8], %s1302
          %1304 = dma.done %s1300, 1024
        $region56: #{tpu_custom_call.1} parent=51 // pred_fallthru
          _
      $region52: #{tpu_custom_call.1} parent=5 // pred_fallthru
        _
    $region6: #{tpu_custom_call.1} parent=1 // loop_footer
      %s20 = sadd.s32 1, %s16
    $region7: #{tpu_custom_call.1} parent=1 // loop_footer_branch
      %15 = sbr.rel target = $region3
    $region8: #{tpu_custom_call.1} parent=1 // loop_exit
      _
    %1305 = vsyncpa [#allocation3], 1
    %s1306 = scalar_lea.sflag [#allocation3], 1
    %1307 = vsyncpa %s1306, 1
    %1308 = vsyncpa [#allocation6], 1
    %1309 = vsyncpa [#allocation4], 1
    %s1310 = scalar_lea.sflag [#allocation4], 1
    %1311 = vsyncpa %s1310, 1

</llo_original>
